<compile_context>
chip_gen: v6e
topology: v6e:2x2x1
jax: 0.10.0
libtpu: 0.0.40
codegen_flags: <defaults>
</compile_context>

<pallas_src>
import functools

import jax
import jax.numpy as jnp
from jax import lax
from jax.experimental import pallas as pl
from jax.experimental.pallas import tpu as pltpu


LANE = 128
SUBLANE = 8
NEG = -1e30  # finite "-inf": avoids 0 * inf = NaN in masked arithmetic


def _round_up(x, m):
    return (x + m - 1) // m * m


def _vmem_limit(needed_bytes):
    # Never below the default scoped limits, never above v7x's 64 MiB physical.
    return int(min(max(2 * needed_bytes + (8 << 20), 32 << 20), 64 << 20))


def _cost_estimate(B_pad, D, N_pad, n_heads):
    return pl.CostEstimate(
        flops=2 * B_pad * D * N_pad + 12 * n_heads * B_pad * N_pad,
        transcendentals=n_heads * B_pad * N_pad + 2 * n_heads * B_pad,
        bytes_accessed=(4 * B_pad * D + 2 * D * N_pad + 4 * N_pad
                        + 4 * B_pad * N_pad + 8 * B_pad * n_heads),
    )


# ---------------------------------------------------------------------------
# Kernel: packed multi-head linear + fused per-head log-softmax / entropy /
# argmax epilogue.
#   logits = bf16(x) @ bf16(W) + b          (padded columns get bias ~NEG)
#   lp[:, lo:hi]  = log_softmax(logits[:, lo:hi])     per head (lo, hi)
#   ent[:, h]     = entropy of head h
#   mode[:, h]    = argmax of head h (first maximal index)
# ---------------------------------------------------------------------------
def _multihead_kernel(x_ref, w_ref, b_ref, lp_ref, ent_ref, mode_ref, *,
                      head_bounds, n_pad):
    # MXU runs natively in bf16; accumulate in f32.
    x = x_ref[...].astype(jnp.bfloat16)
    logits = jnp.dot(x, w_ref[...], preferred_element_type=jnp.float32) + b_ref[...]

    # Stash logits in the output buffer and re-load per head from VMEM below:
    # keeps live ranges short (no full-tile f32 value held across the loop),
    # so no spill stores compete with the output vst path.
    lp_ref[...] = logits

    col = lax.broadcasted_iota(jnp.int32, (1, n_pad), 1)      # (1, n_pad)
    ents, modes = [], []
    for lo, hi in head_bounds:                                 # static bounds
        mask = (col >= lo) & (col < hi)                        # (1, n_pad) bool
        ml = jnp.where(mask, lp_ref[...], NEG)                 # reload from VMEM
        m = jnp.max(ml, axis=-1, keepdims=True)                # (tm, 1)
        e = jnp.where(mask, jnp.exp(ml - m), 0.0)              # padding -> 0
        s = jnp.sum(e, axis=-1, keepdims=True)                 # (tm, 1)
        lse = jnp.log(s) + m                                   # (tm, 1)

        # Fused entropy of this head (EUP/XLU work, free next to the matmul).
        p = e * pl.reciprocal(s, approx=True)
        lpm = jnp.where(mask, ml - lse, 0.0)
        ents.append(-jnp.sum(p * lpm, axis=-1, keepdims=True))

        # Fused argmax (first maximal index, like torch.argmax).
        idx = jnp.where(ml == m, (col - lo).astype(jnp.float32), float(n_pad))
        modes.append(jnp.min(idx, axis=-1, keepdims=True).astype(jnp.int32))

        # Finalize log-softmax for this head's columns only.
        lp_ref[...] = jnp.where(mask, lp_ref[...] - lse, lp_ref[...])

    ent_ref[...] = jnp.concatenate(ents, axis=-1)              # (tm, n_heads)
    mode_ref[...] = jnp.concatenate(modes, axis=-1)            # (tm, n_heads)


def multihead_forward(x, w_cat, b_cat, head_bounds, *, batch_tile=512,
                      small_batch_max=256):
    """Returns (lp, ent, mode_idx) with shapes (B, N_pad), (B, H), (B, H)."""
    B, D = x.shape
    D_w, N_pad = w_cat.shape
    assert D_w == D and N_pad % LANE == 0
    n_heads = len(head_bounds)
    b2d = b_cat.reshape(1, N_pad).astype(jnp.float32)
    kernel = functools.partial(_multihead_kernel,
                               head_bounds=tuple(head_bounds), n_pad=N_pad)

    def out_shapes(rows):
        return (jax.ShapeDtypeStruct((rows, N_pad), jnp.float32),
                jax.ShapeDtypeStruct((rows, n_heads), jnp.float32),
                jax.ShapeDtypeStruct((rows, n_heads), jnp.int32))

    small_rows = _round_up(max(B, 1), SUBLANE)
    small_bytes = (small_rows * D * 4 + D * N_pad * 2 + N_pad * 4
                   + small_rows * N_pad * 4 + small_rows * n_heads * 8)

    if B <= small_batch_max and small_bytes <= (32 << 20):
        # Small batch: single whole-array VMEM block, no grid / pipelining
        # machinery, explicit VMEM limit (v5e's scoped default is only 16 MiB).
        B_pad = small_rows
        x_pad = jnp.pad(x, ((0, B_pad - B), (0, 0))) if B_pad != B else x
        vmem = pl.BlockSpec(memory_space=pltpu.MemorySpace.VMEM)
        lp, ent, mode = pl.pallas_call(
            kernel,
            out_shape=out_shapes(B_pad),
            in_specs=[vmem, vmem, vmem],
            out_specs=(vmem, vmem, vmem),
            compiler_params=pltpu.CompilerParams(
                vmem_limit_bytes=_vmem_limit(small_bytes)),
            cost_estimate=_cost_estimate(B_pad, D, N_pad, n_heads),
        )(x_pad, w_cat, b2d)
    else:
        # Batch-tiled grid: weights/bias stay resident (constant index_map),
        # batch axis is "parallel" so megacore / v7x can shard it.  Guarantee a
        # grid of >=2 steps when B allows it.
        half = _round_up(-(-B // 2), SUBLANE)
        tm = max(SUBLANE, min(batch_tile, half))
        B_pad = _round_up(B, tm)
        x_pad = jnp.pad(x, ((0, B_pad - B), (0, 0))) if B_pad != B else x
        grid = (B_pad // tm,)
        step_bytes = 2 * (tm * D * 4 + D * N_pad * 2 + N_pad * 4
                          + tm * N_pad * 4 + tm * n_heads * 8)
        # TODO(synk): on v7x (64 MiB VMEM) single-buffer the grid-invariant
        # w/b blocks with pipeline_mode=pl.Buffered(1) once validated there.
        lp, ent, mode = pl.pallas_call(
            kernel,
            out_shape=out_shapes(B_pad),
            grid=grid,
            in_specs=[pl.BlockSpec((tm, D), lambda i: (i, 0)),
                      pl.BlockSpec((D, N_pad), lambda i: (0, 0)),
                      pl.BlockSpec((1, N_pad), lambda i: (0, 0))],
            out_specs=(pl.BlockSpec((tm, N_pad), lambda i: (i, 0)),
                       pl.BlockSpec((tm, n_heads), lambda i: (i, 0)),
                       pl.BlockSpec((tm, n_heads), lambda i: (i, 0))),
            compiler_params=pltpu.CompilerParams(
                dimension_semantics=("parallel",),
                vmem_limit_bytes=_vmem_limit(step_bytes)),
            cost_estimate=_cost_estimate(B_pad, D, N_pad, n_heads),
        )(x_pad, w_cat, b2d)

    if B_pad != B:
        lp, ent, mode = lp[:B], ent[:B], mode[:B]
    return lp, ent, mode


# ---------------------------------------------------------------------------
# Distribution glue (plain JAX) reproducing CustomFixedMultiCategorical,
# consuming the kernel's fused outputs directly.
# ---------------------------------------------------------------------------
class MultiCategorical:
    def __init__(self, lp, ent, mode_idx, num_outputs_list, head_bounds):
        self._lp = lp              # (B, N_pad): per-head log-softmax (packed)
        self._ent = ent            # (B, H): fused per-head entropy
        self._mode = mode_idx      # (B, H): fused per-head argmax
        self.num_outputs_list = list(num_outputs_list)
        self.head_bounds = tuple(head_bounds)

    def _head_lp(self, i):
        lo, hi = self.head_bounds[i]
        return self._lp[:, lo:hi]

    def mode(self):
        return self._mode                                           # (B, H)

    def entropy(self):
        return self._ent.mean(axis=1)                               # (B,)

    def log_probs(self, actions):
        lps = []
        for i in range(len(self.num_outputs_list)):
            a = actions[:, i][:, None]
            lps.append(jnp.take_along_axis(self._head_lp(i), a, axis=1))
        return jnp.concatenate(lps, axis=1).sum(axis=1, keepdims=True)  # (B,1)

    def sample(self, key):
        keys = jax.random.split(key, len(self.num_outputs_list))
        cols = [jax.random.categorical(k, self._head_lp(i))[:, None]
                for i, k in enumerate(keys)]
        return jnp.concatenate(cols, axis=1)                        # (B, H)


# ---------------------------------------------------------------------------
# Parameter init (deterministic, mirrors orthogonal_(gain=0.01) + zero bias).
# ---------------------------------------------------------------------------
def orthogonal_init(key, rows, cols, gain):
    n = max(rows, cols)
    a = jax.random.normal(key, (n, n), dtype=jnp.float32)
    q, r = jnp.linalg.qr(a)
    q = q * jnp.sign(jnp.diag(r))[None, :]
    return gain * q[:rows, :cols]


class MultiCategoricalNet:
    def __init__(self, num_inputs, num_outputs_list, key):
        self.num_inputs = int(num_inputs)
        self.num_outputs_list = [int(k) for k in num_outputs_list]
        self.n_heads = len(self.num_outputs_list)

        # Head packing: heads share lane groups; N_pad = round_up(sum K, 128).
        bounds, off = [], 0
        for k in self.num_outputs_list:
            bounds.append((off, off + k))
            off += k
        self.head_bounds = tuple(bounds)
        self.n_pad = max(LANE, _round_up(off, LANE))

        keys = jax.random.split(key, self.n_heads)
        w_cat = jnp.zeros((self.num_inputs, self.n_pad), jnp.float32)
        # Padded columns get bias ~-inf so they never carry probability mass.
        b_cat = jnp.full((self.n_pad,), NEG, jnp.float32)
        self.w_heads = []                      # unpadded (D, K_i), f32 reference
        for (lo, hi), k, n_out in zip(self.head_bounds, keys,
                                      self.num_outputs_list):
            w = orthogonal_init(k, n_out, self.num_inputs, gain=0.01)   # (K, D)
            wt = w.T                                                    # (D, K)
            self.w_heads.append(wt)
            w_cat = w_cat.at[:, lo:hi].set(wt)
            b_cat = b_cat.at[lo:hi].set(0.0)
        # bf16 weights: halves weight DMA + VMEM; accumulation stays f32.
        self.w_cat = w_cat.astype(jnp.bfloat16)     # (D, N_pad)
        self.b_cat = b_cat                          # (N_pad,) f32

    def __call__(self, x):
        lp, ent, mode_idx = multihead_forward(
            x, self.w_cat, self.b_cat, self.head_bounds)
        return MultiCategorical(lp, ent, mode_idx,
                                self.num_outputs_list, self.head_bounds)


# ---------------------------------------------------------------------------
if __name__ == "__main__":
    key = jax.random.PRNGKey(0)
    k_param, k_x, k_xb, k_sample = jax.random.split(key, 4)

    batch = 2
    num_inputs = 32
    num_outputs_list = [5, 3, 4]

    net = MultiCategoricalNet(num_inputs, num_outputs_list, k_param)
    x = jax.random.normal(k_x, (batch, num_inputs), dtype=jnp.float32)

    # --- small-batch (no-grid) path ---
    dist = net(x)
    jax.block_until_ready(dist._lp)
    mode = jax.block_until_ready(dist.mode())
    ent = jax.block_until_ready(dist.entropy())
    actions = jax.block_until_ready(dist.sample(k_sample))
    lp_act = jax.block_until_ready(dist.log_probs(actions))

    # Reference computed in the same precision regime as the kernel
    # (bf16 MXU inputs, f32 accumulation and epilogue).
    x_bf = x.astype(jnp.bfloat16)
    ent_heads = []
    for i, (lo, hi) in enumerate(net.head_bounds):
        w_bf = net.w_heads[i].astype(jnp.bfloat16)
        ref_logits = jnp.dot(x_bf, w_bf, preferred_element_type=jnp.float32)
        ref_lp = ref_logits - jax.scipy.special.logsumexp(
            ref_logits, axis=-1, keepdims=True)
        got_lp = dist._head_lp(i)
        assert got_lp.shape == ref_lp.shape
        assert jnp.allclose(got_lp, ref_lp, atol=5e-4, rtol=1e-3), f"head {i} lp"
        picked = jnp.take_along_axis(ref_lp, mode[:, i][:, None], axis=1)[:, 0]
        assert bool(jnp.all(picked >= ref_lp.max(axis=-1) - 1e-3)), f"head {i} mode"
        ent_heads.append(-(jnp.exp(ref_lp) * ref_lp).sum(axis=-1))
    ref_ent = jnp.stack(ent_heads, axis=1).mean(axis=1)
    assert jnp.allclose(ent, ref_ent, atol=2e-2), "entropy"

    assert mode.shape == (batch, len(num_outputs_list))
    assert ent.shape == (batch,)
    assert actions.shape == (batch, len(num_outputs_list))
    assert lp_act.shape == (batch, 1)
    assert bool(jnp.all(jnp.isfinite(lp_act)))
    assert bool(jnp.all(actions >= 0))
    assert bool(jnp.all(actions < jnp.array(num_outputs_list)[None, :]))

    # --- batch-tiled (parallel grid) path ---
    big_batch = 1000
    xb = jax.random.normal(k_xb, (big_batch, num_inputs), dtype=jnp.float32)
    dist_b = net(xb)
    lp_b = jax.block_until_ready(dist_b._lp)
    mode_b = jax.block_until_ready(dist_b.mode())
    ent_b = jax.block_until_ready(dist_b.entropy())
    assert lp_b.shape == (big_batch, net.n_pad)
    assert mode_b.shape == (big_batch, len(num_outputs_list))
    assert ent_b.shape == (big_batch,)
    ref0 = jnp.dot(xb.astype(jnp.bfloat16), net.w_heads[0].astype(jnp.bfloat16),
                   preferred_element_type=jnp.float32)
    ref0 = ref0 - jax.scipy.special.logsumexp(ref0, axis=-1, keepdims=True)
    assert jnp.allclose(dist_b._head_lp(0), ref0, atol=5e-4, rtol=1e-3), "grid lp"
    assert bool(jnp.all(jnp.isfinite(ent_b)))

    print("KERNEL_OK")
</pallas_src>

<mosaic_0001>
module attributes {stable_mosaic.version = 11 : i64} {
  func.func @_multihead_kernel(%arg0: memref<8x32xf32, #tpu.memory_space<vmem>>, %arg1: memref<32x128xbf16, #tpu.memory_space<vmem>>, %arg2: memref<1x128xf32, #tpu.memory_space<vmem>>, %arg3: memref<8x128xf32, #tpu.memory_space<vmem>>, %arg4: memref<8x3xf32, #tpu.memory_space<vmem>>, %arg5: memref<8x3xi32, #tpu.memory_space<vmem>>) attributes {dimension_semantics = [], scalar_prefetch = 0 : i64, scratch_operands = 0 : i64, tpu.core_type = #tpu.core_type<tc>} {
    %c0 = arith.constant 0 : index
    %c0_0 = arith.constant 0 : index
    %0 = vector.load %arg0[%c0, %c0_0] : memref<8x32xf32, #tpu.memory_space<vmem>>, vector<8x32xf32>
    %1 = arith.truncf %0 : vector<8x32xf32> to vector<8x32xbf16>
    %c0_1 = arith.constant 0 : index
    %c0_2 = arith.constant 0 : index
    %2 = vector.load %arg1[%c0_1, %c0_2] : memref<32x128xbf16, #tpu.memory_space<vmem>>, vector<32x128xbf16>
    %cst = arith.constant dense<0.000000e+00> : vector<8x128xf32>
    %3 = tpu.matmul %1, %2, %cst {dimension_numbers = #tpu.dot_dimension_numbers<[1], [0], [0], [1], [0, 0, 1, 1], [], []>} : vector<8x32xbf16>, vector<32x128xbf16>, vector<8x128xf32> -> vector<8x128xf32>
    %c0_3 = arith.constant 0 : index
    %c0_4 = arith.constant 0 : index
    %4 = vector.load %arg2[%c0_3, %c0_4] : memref<1x128xf32, #tpu.memory_space<vmem>>, vector<1x128xf32>
    %5 = vector.broadcast %4 : vector<1x128xf32> to vector<8x128xf32>
    %6 = arith.addf %3, %5 : vector<8x128xf32>
    %c0_5 = arith.constant 0 : index
    %c0_6 = arith.constant 0 : index
    %7 = vector.load %arg3[%c0_5, %c0_6] : memref<8x128xf32, #tpu.memory_space<vmem>>, vector<8x128xf32>
    tpu.vector_store %arg3[%c0_5, %c0_6], %6 {strides = array<i32>} : memref<8x128xf32, #tpu.memory_space<vmem>>, vector<8x128xf32>,
    %8 = tpu.iota {dimensions = array<i32: 1>} : vector<1x128xi32>
    %c0_i32 = arith.constant 0 : i32
    %9 = vector.broadcast %c0_i32 : i32 to vector<1x128xi32>
    %10 = arith.cmpi sge, %8, %9 : vector<1x128xi32>
    %c5_i32 = arith.constant 5 : i32
    %11 = vector.broadcast %c5_i32 : i32 to vector<1x128xi32>
    %12 = arith.cmpi slt, %8, %11 : vector<1x128xi32>
    %13 = arith.andi %10, %12 : vector<1x128xi1>
    %c0_7 = arith.constant 0 : index
    %c0_8 = arith.constant 0 : index
    %14 = vector.load %arg3[%c0_7, %c0_8] : memref<8x128xf32, #tpu.memory_space<vmem>>, vector<8x128xf32>
    %cst_9 = arith.constant -1.000000e+30 : f32
    %15 = vector.shape_cast %13 : vector<1x128xi1> to vector<1x128xi1>
    %16 = vector.broadcast %15 : vector<1x128xi1> to vector<8x128xi1>
    %17 = vector.broadcast %cst_9 : f32 to vector<8x128xf32>
    %18 = arith.select %16, %14, %17 : vector<8x128xi1>, vector<8x128xf32>
    %cst_10 = arith.constant dense<0xFF800000> : vector<8xf32>
    %19 = vector.multi_reduction <maximumf>, %18, %cst_10 [1] : vector<8x128xf32> to vector<8xf32>
    %20 = vector.shape_cast %19 : vector<8xf32> to vector<8x1xf32>
    %21 = vector.broadcast %20 : vector<8x1xf32> to vector<8x128xf32>
    %22 = arith.subf %18, %21 : vector<8x128xf32>
    %23 = math.exp %22 : vector<8x128xf32>
    %cst_11 = arith.constant 0.000000e+00 : f32
    %24 = vector.shape_cast %13 : vector<1x128xi1> to vector<1x128xi1>
    %25 = vector.broadcast %24 : vector<1x128xi1> to vector<8x128xi1>
    %26 = vector.broadcast %cst_11 : f32 to vector<8x128xf32>
    %27 = arith.select %25, %23, %26 : vector<8x128xi1>, vector<8x128xf32>
    %cst_12 = arith.constant dense<0.000000e+00> : vector<8xf32>
    %28 = vector.multi_reduction <add>, %27, %cst_12 [1] : vector<8x128xf32> to vector<8xf32>
    %29 = vector.shape_cast %28 : vector<8xf32> to vector<8x1xf32>
    %30 = math.log %29 : vector<8x1xf32>
    %31 = arith.addf %30, %20 : vector<8x1xf32>
    %32 = tpu.reciprocal %29 {approx = true} : vector<8x1xf32> -> vector<8x1xf32>
    %33 = vector.broadcast %32 : vector<8x1xf32> to vector<8x128xf32>
    %34 = arith.mulf %27, %33 : vector<8x128xf32>
    %35 = vector.broadcast %31 : vector<8x1xf32> to vector<8x128xf32>
    %36 = arith.subf %18, %35 : vector<8x128xf32>
    %cst_13 = arith.constant 0.000000e+00 : f32
    %37 = vector.shape_cast %13 : vector<1x128xi1> to vector<1x128xi1>
    %38 = vector.broadcast %37 : vector<1x128xi1> to vector<8x128xi1>
    %39 = vector.broadcast %cst_13 : f32 to vector<8x128xf32>
    %40 = arith.select %38, %36, %39 : vector<8x128xi1>, vector<8x128xf32>
    %41 = arith.mulf %34, %40 : vector<8x128xf32>
    %cst_14 = arith.constant dense<0.000000e+00> : vector<8xf32>
    %42 = vector.multi_reduction <add>, %41, %cst_14 [1] : vector<8x128xf32> to vector<8xf32>
    %43 = vector.shape_cast %42 : vector<8xf32> to vector<8x1xf32>
    %cst_15 = arith.constant 0.000000e+00 : f32
    %44 = vector.broadcast %cst_15 : f32 to vector<8x1xf32>
    %45 = arith.subf %44, %43 : vector<8x1xf32>
    %46 = vector.broadcast %20 : vector<8x1xf32> to vector<8x128xf32>
    %47 = arith.cmpf oeq, %18, %46 : vector<8x128xf32>
    %c0_i32_16 = arith.constant 0 : i32
    %48 = vector.broadcast %c0_i32_16 : i32 to vector<1x128xi32>
    %49 = arith.subi %8, %48 : vector<1x128xi32>
    %50 = arith.sitofp %49 : vector<1x128xi32> to vector<1x128xf32>
    %cst_17 = arith.constant 1.280000e+02 : f32
    %51 = vector.shape_cast %50 : vector<1x128xf32> to vector<1x128xf32>
    %52 = vector.broadcast %51 : vector<1x128xf32> to vector<8x128xf32>
    %53 = vector.broadcast %cst_17 : f32 to vector<8x128xf32>
    %54 = arith.select %47, %52, %53 : vector<8x128xi1>, vector<8x128xf32>
    %cst_18 = arith.constant dense<0x7F800000> : vector<8xf32>
    %55 = vector.multi_reduction <minimumf>, %54, %cst_18 [1] : vector<8x128xf32> to vector<8xf32>
    %56 = vector.shape_cast %55 : vector<8xf32> to vector<8x1xf32>
    %57 = arith.fptosi %56 : vector<8x1xf32> to vector<8x1xi32>
    %c0_19 = arith.constant 0 : index
    %c0_20 = arith.constant 0 : index
    %58 = vector.load %arg3[%c0_19, %c0_20] : memref<8x128xf32, #tpu.memory_space<vmem>>, vector<8x128xf32>
    %59 = vector.broadcast %31 : vector<8x1xf32> to vector<8x128xf32>
    %60 = arith.subf %58, %59 : vector<8x128xf32>
    %c0_21 = arith.constant 0 : index
    %c0_22 = arith.constant 0 : index
    %61 = vector.load %arg3[%c0_21, %c0_22] : memref<8x128xf32, #tpu.memory_space<vmem>>, vector<8x128xf32>
    %62 = vector.shape_cast %13 : vector<1x128xi1> to vector<1x128xi1>
    %63 = vector.broadcast %62 : vector<1x128xi1> to vector<8x128xi1>
    %64 = arith.select %63, %60, %61 : vector<8x128xi1>, vector<8x128xf32>
    %c0_23 = arith.constant 0 : index
    %c0_24 = arith.constant 0 : index
    %65 = vector.load %arg3[%c0_23, %c0_24] : memref<8x128xf32, #tpu.memory_space<vmem>>, vector<8x128xf32>
    tpu.vector_store %arg3[%c0_23, %c0_24], %64 {strides = array<i32>} : memref<8x128xf32, #tpu.memory_space<vmem>>, vector<8x128xf32>,
    %c5_i32_25 = arith.constant 5 : i32
    %66 = vector.broadcast %c5_i32_25 : i32 to vector<1x128xi32>
    %67 = arith.cmpi sge, %8, %66 : vector<1x128xi32>
    %c8_i32 = arith.constant 8 : i32
    %68 = vector.broadcast %c8_i32 : i32 to vector<1x128xi32>
    %69 = arith.cmpi slt, %8, %68 : vector<1x128xi32>
    %70 = arith.andi %67, %69 : vector<1x128xi1>
    %c0_26 = arith.constant 0 : index
    %c0_27 = arith.constant 0 : index
    %71 = vector.load %arg3[%c0_26, %c0_27] : memref<8x128xf32, #tpu.memory_space<vmem>>, vector<8x128xf32>
    %cst_28 = arith.constant -1.000000e+30 : f32
    %72 = vector.shape_cast %70 : vector<1x128xi1> to vector<1x128xi1>
    %73 = vector.broadcast %72 : vector<1x128xi1> to vector<8x128xi1>
    %74 = vector.broadcast %cst_28 : f32 to vector<8x128xf32>
    %75 = arith.select %73, %71, %74 : vector<8x128xi1>, vector<8x128xf32>
    %cst_29 = arith.constant dense<0xFF800000> : vector<8xf32>
    %76 = vector.multi_reduction <maximumf>, %75, %cst_29 [1] : vector<8x128xf32> to vector<8xf32>
    %77 = vector.shape_cast %76 : vector<8xf32> to vector<8x1xf32>
    %78 = vector.broadcast %77 : vector<8x1xf32> to vector<8x128xf32>
    %79 = arith.subf %75, %78 : vector<8x128xf32>
    %80 = math.exp %79 : vector<8x128xf32>
    %cst_30 = arith.constant 0.000000e+00 : f32
    %81 = vector.shape_cast %70 : vector<1x128xi1> to vector<1x128xi1>
    %82 = vector.broadcast %81 : vector<1x128xi1> to vector<8x128xi1>
    %83 = vector.broadcast %cst_30 : f32 to vector<8x128xf32>
    %84 = arith.select %82, %80, %83 : vector<8x128xi1>, vector<8x128xf32>
    %cst_31 = arith.constant dense<0.000000e+00> : vector<8xf32>
    %85 = vector.multi_reduction <add>, %84, %cst_31 [1] : vector<8x128xf32> to vector<8xf32>
    %86 = vector.shape_cast %85 : vector<8xf32> to vector<8x1xf32>
    %87 = math.log %86 : vector<8x1xf32>
    %88 = arith.addf %87, %77 : vector<8x1xf32>
    %89 = tpu.reciprocal %86 {approx = true} : vector<8x1xf32> -> vector<8x1xf32>
    %90 = vector.broadcast %89 : vector<8x1xf32> to vector<8x128xf32>
    %91 = arith.mulf %84, %90 : vector<8x128xf32>
    %92 = vector.broadcast %88 : vector<8x1xf32> to vector<8x128xf32>
    %93 = arith.subf %75, %92 : vector<8x128xf32>
    %cst_32 = arith.constant 0.000000e+00 : f32
    %94 = vector.shape_cast %70 : vector<1x128xi1> to vector<1x128xi1>
    %95 = vector.broadcast %94 : vector<1x128xi1> to vector<8x128xi1>
    %96 = vector.broadcast %cst_32 : f32 to vector<8x128xf32>
    %97 = arith.select %95, %93, %96 : vector<8x128xi1>, vector<8x128xf32>
    %98 = arith.mulf %91, %97 : vector<8x128xf32>
    %cst_33 = arith.constant dense<0.000000e+00> : vector<8xf32>
    %99 = vector.multi_reduction <add>, %98, %cst_33 [1] : vector<8x128xf32> to vector<8xf32>
    %100 = vector.shape_cast %99 : vector<8xf32> to vector<8x1xf32>
    %cst_34 = arith.constant 0.000000e+00 : f32
    %101 = vector.broadcast %cst_34 : f32 to vector<8x1xf32>
    %102 = arith.subf %101, %100 : vector<8x1xf32>
    %103 = vector.broadcast %77 : vector<8x1xf32> to vector<8x128xf32>
    %104 = arith.cmpf oeq, %75, %103 : vector<8x128xf32>
    %c5_i32_35 = arith.constant 5 : i32
    %105 = vector.broadcast %c5_i32_35 : i32 to vector<1x128xi32>
    %106 = arith.subi %8, %105 : vector<1x128xi32>
    %107 = arith.sitofp %106 : vector<1x128xi32> to vector<1x128xf32>
    %cst_36 = arith.constant 1.280000e+02 : f32
    %108 = vector.shape_cast %107 : vector<1x128xf32> to vector<1x128xf32>
    %109 = vector.broadcast %108 : vector<1x128xf32> to vector<8x128xf32>
    %110 = vector.broadcast %cst_36 : f32 to vector<8x128xf32>
    %111 = arith.select %104, %109, %110 : vector<8x128xi1>, vector<8x128xf32>
    %cst_37 = arith.constant dense<0x7F800000> : vector<8xf32>
    %112 = vector.multi_reduction <minimumf>, %111, %cst_37 [1] : vector<8x128xf32> to vector<8xf32>
    %113 = vector.shape_cast %112 : vector<8xf32> to vector<8x1xf32>
    %114 = arith.fptosi %113 : vector<8x1xf32> to vector<8x1xi32>
    %c0_38 = arith.constant 0 : index
    %c0_39 = arith.constant 0 : index
    %115 = vector.load %arg3[%c0_38, %c0_39] : memref<8x128xf32, #tpu.memory_space<vmem>>, vector<8x128xf32>
    %116 = vector.broadcast %88 : vector<8x1xf32> to vector<8x128xf32>
    %117 = arith.subf %115, %116 : vector<8x128xf32>
    %c0_40 = arith.constant 0 : index
    %c0_41 = arith.constant 0 : index
    %118 = vector.load %arg3[%c0_40, %c0_41] : memref<8x128xf32, #tpu.memory_space<vmem>>, vector<8x128xf32>
    %119 = vector.shape_cast %70 : vector<1x128xi1> to vector<1x128xi1>
    %120 = vector.broadcast %119 : vector<1x128xi1> to vector<8x128xi1>
    %121 = arith.select %120, %117, %118 : vector<8x128xi1>, vector<8x128xf32>
    %c0_42 = arith.constant 0 : index
    %c0_43 = arith.constant 0 : index
    %122 = vector.load %arg3[%c0_42, %c0_43] : memref<8x128xf32, #tpu.memory_space<vmem>>, vector<8x128xf32>
    tpu.vector_store %arg3[%c0_42, %c0_43], %121 {strides = array<i32>} : memref<8x128xf32, #tpu.memory_space<vmem>>, vector<8x128xf32>,
    %c8_i32_44 = arith.constant 8 : i32
    %123 = vector.broadcast %c8_i32_44 : i32 to vector<1x128xi32>
    %124 = arith.cmpi sge, %8, %123 : vector<1x128xi32>
    %c12_i32 = arith.constant 12 : i32
    %125 = vector.broadcast %c12_i32 : i32 to vector<1x128xi32>
    %126 = arith.cmpi slt, %8, %125 : vector<1x128xi32>
    %127 = arith.andi %124, %126 : vector<1x128xi1>
    %c0_45 = arith.constant 0 : index
    %c0_46 = arith.constant 0 : index
    %128 = vector.load %arg3[%c0_45, %c0_46] : memref<8x128xf32, #tpu.memory_space<vmem>>, vector<8x128xf32>
    %cst_47 = arith.constant -1.000000e+30 : f32
    %129 = vector.shape_cast %127 : vector<1x128xi1> to vector<1x128xi1>
    %130 = vector.broadcast %129 : vector<1x128xi1> to vector<8x128xi1>
    %131 = vector.broadcast %cst_47 : f32 to vector<8x128xf32>
    %132 = arith.select %130, %128, %131 : vector<8x128xi1>, vector<8x128xf32>
    %cst_48 = arith.constant dense<0xFF800000> : vector<8xf32>
    %133 = vector.multi_reduction <maximumf>, %132, %cst_48 [1] : vector<8x128xf32> to vector<8xf32>
    %134 = vector.shape_cast %133 : vector<8xf32> to vector<8x1xf32>
    %135 = vector.broadcast %134 : vector<8x1xf32> to vector<8x128xf32>
    %136 = arith.subf %132, %135 : vector<8x128xf32>
    %137 = math.exp %136 : vector<8x128xf32>
    %cst_49 = arith.constant 0.000000e+00 : f32
    %138 = vector.shape_cast %127 : vector<1x128xi1> to vector<1x128xi1>
    %139 = vector.broadcast %138 : vector<1x128xi1> to vector<8x128xi1>
    %140 = vector.broadcast %cst_49 : f32 to vector<8x128xf32>
    %141 = arith.select %139, %137, %140 : vector<8x128xi1>, vector<8x128xf32>
    %cst_50 = arith.constant dense<0.000000e+00> : vector<8xf32>
    %142 = vector.multi_reduction <add>, %141, %cst_50 [1] : vector<8x128xf32> to vector<8xf32>
    %143 = vector.shape_cast %142 : vector<8xf32> to vector<8x1xf32>
    %144 = math.log %143 : vector<8x1xf32>
    %145 = arith.addf %144, %134 : vector<8x1xf32>
    %146 = tpu.reciprocal %143 {approx = true} : vector<8x1xf32> -> vector<8x1xf32>
    %147 = vector.broadcast %146 : vector<8x1xf32> to vector<8x128xf32>
    %148 = arith.mulf %141, %147 : vector<8x128xf32>
    %149 = vector.broadcast %145 : vector<8x1xf32> to vector<8x128xf32>
    %150 = arith.subf %132, %149 : vector<8x128xf32>
    %cst_51 = arith.constant 0.000000e+00 : f32
    %151 = vector.shape_cast %127 : vector<1x128xi1> to vector<1x128xi1>
    %152 = vector.broadcast %151 : vector<1x128xi1> to vector<8x128xi1>
    %153 = vector.broadcast %cst_51 : f32 to vector<8x128xf32>
    %154 = arith.select %152, %150, %153 : vector<8x128xi1>, vector<8x128xf32>
    %155 = arith.mulf %148, %154 : vector<8x128xf32>
    %cst_52 = arith.constant dense<0.000000e+00> : vector<8xf32>
    %156 = vector.multi_reduction <add>, %155, %cst_52 [1] : vector<8x128xf32> to vector<8xf32>
    %157 = vector.shape_cast %156 : vector<8xf32> to vector<8x1xf32>
    %cst_53 = arith.constant 0.000000e+00 : f32
    %158 = vector.broadcast %cst_53 : f32 to vector<8x1xf32>
    %159 = arith.subf %158, %157 : vector<8x1xf32>
    %160 = vector.broadcast %134 : vector<8x1xf32> to vector<8x128xf32>
    %161 = arith.cmpf oeq, %132, %160 : vector<8x128xf32>
    %c8_i32_54 = arith.constant 8 : i32
    %162 = vector.broadcast %c8_i32_54 : i32 to vector<1x128xi32>
    %163 = arith.subi %8, %162 : vector<1x128xi32>
    %164 = arith.sitofp %163 : vector<1x128xi32> to vector<1x128xf32>
    %cst_55 = arith.constant 1.280000e+02 : f32
    %165 = vector.shape_cast %164 : vector<1x128xf32> to vector<1x128xf32>
    %166 = vector.broadcast %165 : vector<1x128xf32> to vector<8x128xf32>
    %167 = vector.broadcast %cst_55 : f32 to vector<8x128xf32>
    %168 = arith.select %161, %166, %167 : vector<8x128xi1>, vector<8x128xf32>
    %cst_56 = arith.constant dense<0x7F800000> : vector<8xf32>
    %169 = vector.multi_reduction <minimumf>, %168, %cst_56 [1] : vector<8x128xf32> to vector<8xf32>
    %170 = vector.shape_cast %169 : vector<8xf32> to vector<8x1xf32>
    %171 = arith.fptosi %170 : vector<8x1xf32> to vector<8x1xi32>
    %c0_57 = arith.constant 0 : index
    %c0_58 = arith.constant 0 : index
    %172 = vector.load %arg3[%c0_57, %c0_58] : memref<8x128xf32, #tpu.memory_space<vmem>>, vector<8x128xf32>
    %173 = vector.broadcast %145 : vector<8x1xf32> to vector<8x128xf32>
    %174 = arith.subf %172, %173 : vector<8x128xf32>
    %c0_59 = arith.constant 0 : index
    %c0_60 = arith.constant 0 : index
    %175 = vector.load %arg3[%c0_59, %c0_60] : memref<8x128xf32, #tpu.memory_space<vmem>>, vector<8x128xf32>
    %176 = vector.shape_cast %127 : vector<1x128xi1> to vector<1x128xi1>
    %177 = vector.broadcast %176 : vector<1x128xi1> to vector<8x128xi1>
    %178 = arith.select %177, %174, %175 : vector<8x128xi1>, vector<8x128xf32>
    %c0_61 = arith.constant 0 : index
    %c0_62 = arith.constant 0 : index
    %179 = vector.load %arg3[%c0_61, %c0_62] : memref<8x128xf32, #tpu.memory_space<vmem>>, vector<8x128xf32>
    tpu.vector_store %arg3[%c0_61, %c0_62], %178 {strides = array<i32>} : memref<8x128xf32, #tpu.memory_space<vmem>>, vector<8x128xf32>,
    %180 = tpu.concatenate %45, %102, %159 in 1 : vector<8x1xf32>, vector<8x1xf32>, vector<8x1xf32> -> vector<8x3xf32>
    %c0_63 = arith.constant 0 : index
    %c0_64 = arith.constant 0 : index
    %181 = vector.load %arg4[%c0_63, %c0_64] : memref<8x3xf32, #tpu.memory_space<vmem>>, vector<8x3xf32>
    tpu.vector_store %arg4[%c0_63, %c0_64], %180 {strides = array<i32>} : memref<8x3xf32, #tpu.memory_space<vmem>>, vector<8x3xf32>,
    %182 = tpu.concatenate %57, %114, %171 in 1 : vector<8x1xi32>, vector<8x1xi32>, vector<8x1xi32> -> vector<8x3xi32>
    %c0_65 = arith.constant 0 : index
    %c0_66 = arith.constant 0 : index
    %183 = vector.load %arg5[%c0_65, %c0_66] : memref<8x3xi32, #tpu.memory_space<vmem>>, vector<8x3xi32>
    tpu.vector_store %arg5[%c0_65, %c0_66], %182 {strides = array<i32>} : memref<8x3xi32, #tpu.memory_space<vmem>>, vector<8x3xi32>,
    return
  }
}

</mosaic_0001>

<llo_original>
// kernel: tpu_custom_call.1
$region0: #{tpu_custom_call.1}
  #allocation0 [shape = 'u32[]', space=smem, size = 0x4, offset = 0x4, fixed_abs, tag = 'smem constant byte address 0x4 - core index']
  #allocation1 [shape = 'u32[144,128]{1,0:T(1,128)}', space=vmem, size = 0x12000, scoped, tag = 'internal scratch']
  %s0 = inlined_call_operand.hbm [shape: f32[8,32], index: 0, kind: input, shape index: {}]
  %s1 = inlined_call_operand.hbm [shape: bf16[32,128], index: 1, kind: input, shape index: {}]
  %s2 = inlined_call_operand.vmem [shape: f32[1,128], index: 2, kind: input, shape index: {}]
  %s3 = inlined_call_operand.hbm [shape: f32[8,128], index: 3, kind: output, shape index: {0}]
  %s4 = inlined_call_operand.vmem [shape: f32[8,3], index: 4, kind: output, shape index: {1}]
  %s5 = inlined_call_operand.vmem [shape: s32[8,3], index: 5, kind: output, shape index: {2}]
  %6 = xla_tuple %s3, %s4, %s5
  %s7 = sld [smem:[#allocation0]]
  $region46: #{tpu_custom_call.1} parent=0
    _
  %s9 = ssub.s32 1, %s7
  %s10 = scalar_select 0, %s9, %s7
  $region1: #{tpu_custom_call.1} parent=0
    #allocation2 [shape = 'u8[4096]{0}', space=vmem, size = 0x1000, scoped, tag = 'input window, operand 0, single buffered']
    #allocation3 [shape = 's32[1]{0}', space=sflag, size = 0x4, scoped, tag = 'scoped memory for tpu_custom_call.1']
    #allocation4 [shape = 's32[1]{0}', space=sflag, size = 0x4, scoped, tag = 'scoped memory for tpu_custom_call.1']
    #allocation5 [shape = 'u8[8192]{0}', space=vmem, size = 0x2000, scoped, tag = 'input window, operand 1, single buffered']
    #allocation6 [shape = 's32[1]{0}', space=sflag, size = 0x4, scoped, tag = 'scoped memory for tpu_custom_call.1']
    #allocation7 [shape = 'u8[4096]{0}', space=vmem, size = 0x1000, scoped, tag = 'output window, operand 0, single buffered']
    %11 = vsyncpa [#allocation3], 0
    %12 = vsyncpa [#allocation6], 0
    %13 = vsyncpa [#allocation4], 0
    // Predicated region
    $region2: #{tpu_custom_call.1} parent=1 // pred_check
      _
    $region3: #{tpu_custom_call.1} parent=1 // pred_check_branch
      %15 = sbr.rel (0) target = $region5
    $region4: #{tpu_custom_call.1} parent=1 // pred_region
      %s17 = ssub.s32 128, 128
      %18 = vsyncadd [#allocation3], %s17
      %s20 = sshll.u32 [#allocation2], 4
      %s21 = int_to_ptr.vmem [resolvable:$true] %s20
      %23 = dma.hbm_to_vmem [thread:$0]  %s0, 128, %s21, [#allocation3]
    $region5: #{tpu_custom_call.1} parent=1 // pred_fallthru
      _
    // Predicated region
    $region6: #{tpu_custom_call.1} parent=1 // pred_check
      _
    $region7: #{tpu_custom_call.1} parent=1 // pred_check_branch
      %25 = sbr.rel (0) target = $region9
    $region8: #{tpu_custom_call.1} parent=1 // pred_region
      %s27 = ssub.s32 256, 256
      %28 = vsyncadd [#allocation6], %s27
      %s29 = sshll.u32 [#allocation5], 4
      %s30 = int_to_ptr.vmem [resolvable:$true] %s29
      %35 = dma.hbm_to_vmem [thread:$0]  %s1, 256, %s30, [#allocation6], 64, 64, 4
    $region9: #{tpu_custom_call.1} parent=1 // pred_fallthru
      _
    // Predicated region
    $region10: #{tpu_custom_call.1} parent=1 // pred_check
      _
    $region11: #{tpu_custom_call.1} parent=1 // pred_check_branch
      %37 = sbr.rel (0) target = $region13
    $region12: #{tpu_custom_call.1} parent=1 // pred_region
      _
    $region13: #{tpu_custom_call.1} parent=1 // pred_fallthru
      _
    // Predicated region
    $region14: #{tpu_custom_call.1} parent=1 // pred_check
      _
    $region15: #{tpu_custom_call.1} parent=1 // pred_check_branch
      %39 = sbr.rel (0) target = $region17
    $region16: #{tpu_custom_call.1} parent=1 // pred_region
      %40 = dma.done [#allocation3], 128
    $region17: #{tpu_custom_call.1} parent=1 // pred_fallthru
      _
    // Predicated region
    $region18: #{tpu_custom_call.1} parent=1 // pred_check
      _
    $region19: #{tpu_custom_call.1} parent=1 // pred_check_branch
      %42 = sbr.rel (0) target = $region21
    $region20: #{tpu_custom_call.1} parent=1 // pred_region
      %43 = dma.done [#allocation6], 256
    $region21: #{tpu_custom_call.1} parent=1 // pred_fallthru
      _
    %v45 = vld [vmem:[#allocation2] sm:$0xff]
    %v46 = vpack.c.bf16 %v45, %v45
    %v47 = vld [vmem:[#allocation5] sm:$0xf]
    %v48 = vld [vmem:[#allocation5 + $0x4] sm:$0xf]
    %v49 = vld [vmem:[#allocation5 + $0x8] sm:$0xf]
    %v50 = vld [vmem:[#allocation5 + $0xc] sm:$0xf]
    %v51 = vld [vmem:[%s2] sm:$0x1]
    %v53 = vlaneseq
    %v54 = vshrl.u32 %v53, 7
    %v55 = vsub.s32 0, %v54
    %v56 = vrot.slane %v51, %v55
    %v62 = vunpack.c.l.b16 %v47
    %v63 = vunpack.c.l.b16 %v48
    %v64 = vunpack.c.l.b16 %v49
    %v65 = vunpack.c.l.b16 %v50
    %v66 = vpack.c.b16 %v63, %v62
    %v67 = vpack.c.b16 %v65, %v64
    %vm70 = vcmask 261120
    %v72 = vsel %vm70, %v46, 0
    %74 = vmatprep.subr.bf16.mxu0 0
    %75 = vmatpush1.bf16.msra.mxu0 0
    %76 = vmatprep.subr.bf16.mxu0 0
    %77 = vmatpush1.bf16.msra.mxu0 0
    %78 = vmatprep.subr.bf16.mxu0 0
    %79 = vmatpush1.bf16.msra.mxu0 0
    %80 = vmatprep.subr.bf16.mxu0 0
    %81 = vmatpush1.bf16.msra.mxu0 0
    %82 = vmatprep.subr.bf16.mxu0 0
    %83 = vmatpush1.bf16.msra.mxu0 0
    %84 = vmatprep.subr.bf16.mxu0 0
    %85 = vmatpush1.bf16.msra.mxu0 0
    %86 = vmatprep.subr.bf16.mxu0 0
    %87 = vmatpush1.bf16.msra.mxu0 %v67
    %88 = vmatprep.subr.bf16.mxu0 0
    %89 = vmatpush1.bf16.msra.mxu0 %v66
    %90 = vmatprep.subr.bf16.mxu0 0
    %91 = vmatpush2.bf16.msra.mxu0 0
    %92 = vmatprep.subr.bf16.mxu0 0
    %93 = vmatpush2.bf16.msra.mxu0 0
    %94 = vmatprep.subr.bf16.mxu0 0
    %95 = vmatpush2.bf16.msra.mxu0 0
    %96 = vmatprep.subr.bf16.mxu0 0
    %97 = vmatpush2.bf16.msra.mxu0 0
    %98 = vmatprep.subr.bf16.mxu0 0
    %99 = vmatpush2.bf16.msra.mxu0 0
    %100 = vmatprep.subr.bf16.mxu0 0
    %101 = vmatpush2.bf16.msra.mxu0 0
    %102 = vmatprep.subr.bf16.mxu0 0
    %103 = vmatpush2.bf16.msra.mxu0 0
    %104 = vmatprep.subr.bf16.mxu0 0
    %105 = vmatpush2.bf16.msra.mxu0 0
    %106 = vmatprep.mubr.bf16.mxu0 0
    %107 = vmatmul.mubr.bf16.gmra.mxu0 %v72
    %v108 = vpop.f32.mrf.mxu0
    %v109 = vadd.f32 %v56, %v108
    %v110 = vpop.f32.mrf.mxu0
    %v111 = vpop.f32.mrf.mxu0
    %v112 = vpop.f32.mrf.mxu0
    %113 = vdwg.mxu0
    %114 = vst [vmem:[#allocation7] sm:$0xff] %v109
    %v115 = vlaneseq
    %v116 = vand.u32 %v115, 127
    %vm117 = vcmp.ge.s32.totalorder %v116, 0
    %vm118 = vcmp.lt.s32.totalorder %v116, 5
    %vm119 = vmand %vm117, %vm118
    %v120 = vld [vmem:[#allocation7] sm:$0xff]
    %v121 = vsel %vm119, 1, 0
    %vm122 = vcmp.eq.s32.totalorder %v121, 1
    %v123 = vsel %vm122, %v120, -1e+30
    %124 = vmax.xlane.f32.xlu0 %v123
    %v125 = vpop.xlane.xlu0 %124
    %v126 = vsub.f32 %v123, %v125
    %v127 = vmul.f32 %v126, 1.442695
    %v128 = vpow.pop %v127
    %v129 = vsel %vm122, %v128, 0.0
    %130 = vadd.xlane.f32.xlu0 %v129
    %v131 = vpop.xlane.xlu0 %130
    %v132 = vlog2.pop %v131
    %v133 = vmul.f32 %v132, 0.6931472
    %v134 = vadd.f32 %v133, %v125
    %v135 = vrcp.pop %v131
    %v136 = vmul.f32 %v129, %v135
    %v137 = vsub.f32 %v123, %v134
    %v138 = vsel %vm122, %v137, 0.0
    %v139 = vmul.f32 %v136, %v138
    %140 = vadd.xlane.f32.xlu0 %v139
    %v141 = vpop.xlane.xlu0 %140
    %v142 = vsub.f32 0.0, %v141
    %vm143 = vcmp.eq.f32.partialorder %v123, %v125
    %v144 = vcvt.s32.f32 %v116
    %v145 = vsel %vm143, %v144, 128.0
    %146 = vmin.xlane.f32.xlu0 %v145
    %v147 = vpop.xlane.xlu0 %146
    %v148 = vcvt.f32.s32.to.zero.pseudo %v147
    %v149 = vsub.f32 %v120, %v134
    %v150 = vsel %vm122, %v149, %v120
    %151 = vst [vmem:[#allocation7] sm:$0xff] %v150
    %vm152 = vcmp.ge.s32.totalorder %v116, 5
    %vm153 = vcmp.lt.s32.totalorder %v116, 8
    %vm154 = vmand %vm152, %vm153
    %v155 = vld [vmem:[#allocation7] sm:$0xff]
    %v156 = vsel %vm154, 1, 0
    %vm157 = vcmp.eq.s32.totalorder %v156, 1
    %v158 = vsel %vm157, %v155, -1e+30
    %159 = vmax.xlane.f32.xlu0 %v158
    %v160 = vpop.xlane.xlu0 %159
    %v161 = vsub.f32 %v158, %v160
    %v162 = vmul.f32 %v161, 1.442695
    %v163 = vpow.pop %v162
    %v164 = vsel %vm157, %v163, 0.0
    %165 = vadd.xlane.f32.xlu0 %v164
    %v166 = vpop.xlane.xlu0 %165
    %v167 = vlog2.pop %v166
    %v168 = vmul.f32 %v167, 0.6931472
    %v169 = vadd.f32 %v168, %v160
    %v170 = vrcp.pop %v166
    %v171 = vmul.f32 %v164, %v170
    %v172 = vsub.f32 %v158, %v169
    %v173 = vsel %vm157, %v172, 0.0
    %v174 = vmul.f32 %v171, %v173
    %175 = vadd.xlane.f32.xlu0 %v174
    %v176 = vpop.xlane.xlu0 %175
    %v177 = vsub.f32 0.0, %v176
    %vm178 = vcmp.eq.f32.partialorder %v158, %v160
    %v179 = vsub.s32 %v116, 5
    %v180 = vcvt.s32.f32 %v179
    %v181 = vsel %vm178, %v180, 128.0
    %182 = vmin.xlane.f32.xlu0 %v181
    %v183 = vpop.xlane.xlu0 %182
    %v184 = vcvt.f32.s32.to.zero.pseudo %v183
    %v185 = vsub.f32 %v155, %v169
    %v186 = vsel %vm157, %v185, %v155
    %187 = vst [vmem:[#allocation7] sm:$0xff] %v186
    %vm188 = vcmp.ge.s32.totalorder %v116, 8
    %vm189 = vcmp.lt.s32.totalorder %v116, 12
    %vm190 = vmand %vm188, %vm189
    %v191 = vld [vmem:[#allocation7] sm:$0xff]
    %v192 = vsel %vm190, 1, 0
    %vm193 = vcmp.eq.s32.totalorder %v192, 1
    %v194 = vsel %vm193, %v191, -1e+30
    %195 = vmax.xlane.f32.xlu0 %v194
    %v196 = vpop.xlane.xlu0 %195
    %v197 = vsub.f32 %v194, %v196
    %v198 = vmul.f32 %v197, 1.442695
    %v199 = vpow.pop %v198
    %v200 = vsel %vm193, %v199, 0.0
    %201 = vadd.xlane.f32.xlu0 %v200
    %v202 = vpop.xlane.xlu0 %201
    %v203 = vlog2.pop %v202
    %v204 = vmul.f32 %v203, 0.6931472
    %v205 = vadd.f32 %v204, %v196
    %v206 = vrcp.pop %v202
    %v207 = vmul.f32 %v200, %v206
    %v208 = vsub.f32 %v194, %v205
    %v209 = vsel %vm193, %v208, 0.0
    %v210 = vmul.f32 %v207, %v209
    %211 = vadd.xlane.f32.xlu0 %v210
    %v212 = vpop.xlane.xlu0 %211
    %v213 = vsub.f32 0.0, %v212
    %vm214 = vcmp.eq.f32.partialorder %v194, %v196
    %v215 = vsub.s32 %v116, 8
    %v216 = vcvt.s32.f32 %v215
    %v217 = vsel %vm214, %v216, 128.0
    %218 = vmin.xlane.f32.xlu0 %v217
    %v219 = vpop.xlane.xlu0 %218
    %v220 = vcvt.f32.s32.to.zero.pseudo %v219
    %v221 = vsub.f32 %v191, %v205
    %v222 = vsel %vm193, %v221, %v191
    %223 = vst [vmem:[#allocation7] sm:$0xff] %v222
    %vm224 = vcmask 7168
    %v225 = vsel %vm224, %v142, %v177
    %vm226 = vcmask 15360
    %v227 = vsel %vm226, %v225, %v213
    %vm228 = vcmask 23552
    %229 = vst.msk [vmem:[%s4] sm:$0xff] %vm228, %v227
    %v230 = vsel %vm224, %v148, %v184
    %v231 = vsel %vm226, %v230, %v220
    %232 = vst.msk [vmem:[%s5] sm:$0xff] %vm228, %v231
    // Predicated region
    $region22: #{tpu_custom_call.1} parent=1 // pred_check
      _
    $region23: #{tpu_custom_call.1} parent=1 // pred_check_branch
      %234 = sbr.rel (0) target = $region25
    $region24: #{tpu_custom_call.1} parent=1 // pred_region
      %s236 = ssub.s32 128, 128
      %237 = vsyncadd [#allocation4], %s236
      %s239 = sshll.u32 [#allocation7], 4
      %s240 = int_to_ptr.vmem [resolvable:$true] %s239
      %242 = dma.vmem_to_hbm [thread:$0]  %s240, 128, %s3, [#allocation4]
    $region25: #{tpu_custom_call.1} parent=1 // pred_fallthru
      _
    // Predicated region
    $region26: #{tpu_custom_call.1} parent=1 // pred_check
      _
    $region27: #{tpu_custom_call.1} parent=1 // pred_check_branch
      %244 = sbr.rel (0) target = $region29
    $region28: #{tpu_custom_call.1} parent=1 // pred_region
      _
    $region29: #{tpu_custom_call.1} parent=1 // pred_fallthru
      _
    // Predicated region
    $region30: #{tpu_custom_call.1} parent=1 // pred_check
      _
    $region31: #{tpu_custom_call.1} parent=1 // pred_check_branch
      %246 = sbr.rel (0) target = $region33
    $region32: #{tpu_custom_call.1} parent=1 // pred_region
      _
    $region33: #{tpu_custom_call.1} parent=1 // pred_fallthru
      _
    // Predicated region
    $region34: #{tpu_custom_call.1} parent=1 // pred_check
      _
    $region35: #{tpu_custom_call.1} parent=1 // pred_check_branch
      %248 = sbr.rel (0) target = $region37
    $region36: #{tpu_custom_call.1} parent=1 // pred_region
      %249 = dma.done [#allocation4], 128
    $region37: #{tpu_custom_call.1} parent=1 // pred_fallthru
      _
    // Predicated region
    $region38: #{tpu_custom_call.1} parent=1 // pred_check
      _
    $region39: #{tpu_custom_call.1} parent=1 // pred_check_branch
      %251 = sbr.rel (0) target = $region41
    $region40: #{tpu_custom_call.1} parent=1 // pred_region
      _
    $region41: #{tpu_custom_call.1} parent=1 // pred_fallthru
      _
    // Predicated region
    $region42: #{tpu_custom_call.1} parent=1 // pred_check
      _
    $region43: #{tpu_custom_call.1} parent=1 // pred_check_branch
      %253 = sbr.rel (0) target = $region45
    $region44: #{tpu_custom_call.1} parent=1 // pred_region
      _
    $region45: #{tpu_custom_call.1} parent=1 // pred_fallthru
      _
    %254 = vsyncpa [#allocation3], 1
    %255 = vsyncpa [#allocation6], 1
    %256 = vsyncpa [#allocation4], 1

</llo_original>
